<compile_context>
chip_gen: v7x
topology: tpu7x:2x2x1
jax: 0.10.0
libtpu: 0.0.40
codegen_flags: <defaults>
</compile_context>

<pallas_src>
import functools

import jax
import jax.numpy as jnp
from jax import lax
from jax.experimental import pallas as pl
from jax.experimental.pallas import tpu as pltpu

EPS = 1e-6  # matches GeM(eps=1e-06)


def _round_up(a, b):
    return ((a + b - 1) // b) * b


def _tpu_flavor():
    """Returns (bf16_eup_ok, vmem_limit_bytes, target_block_bytes)."""
    kind = ""
    try:
        kind = jax.devices()[0].device_kind.lower()
    except Exception:
        pass
    is_v7 = ("v7" in kind) or ("tpu7" in kind)
    bf16_eup = ("v6" in kind) or is_v7          # v5e and older: no bf16 EUP
    if is_v7:
        # 64 MiB physical VMEM per TensorCore: stay conservative.
        return bf16_eup, 32 * 1024 * 1024, 4 * 1024 * 1024
    if any(s in kind for s in ("v2", "v3", "v4", "v5", "v6")):
        # 128 MiB physical VMEM: larger blocks amortize per-grid-step overhead.
        return bf16_eup, 64 * 1024 * 1024, 8 * 1024 * 1024
    # Unknown chip: conservative defaults, pure f32.
    return False, 32 * 1024 * 1024, 4 * 1024 * 1024


def _pow_p(x, p, use_bf16):
    """x ** p for x > 0 via exp(p * log(x)); returns f32."""
    t = p * jnp.log(x)  # log and the p* multiply stay f32 for accuracy
    if use_bf16:
        # bf16 exp runs on the EUP at ~2x throughput on v6e/v7x.
        return jnp.exp(t.astype(jnp.bfloat16)).astype(jnp.float32)
    return jnp.exp(t)


def _gem_row_kernel_single(p_ref, x_ref, o_ref, *, hw, use_bf16):
    # Full spatial extent in one block (tk == HW): no scratch, no k-predicates.
    # p_ref: (1,) f32 SMEM; x_ref: (tm, HW) VMEM; o_ref: (tm, 1).
    p = p_ref[0]
    x = jnp.maximum(x_ref[...].astype(jnp.float32), EPS)
    xp = _pow_p(x, p, use_bf16)
    m = jnp.sum(xp, axis=-1, keepdims=True) * (1.0 / hw)      # mean over spatial
    o_ref[...] = jnp.exp(jnp.log(m) * (1.0 / p)).astype(o_ref.dtype)  # ** (1/p)


def _gem_row_kernel_multi(p_ref, x_ref, o_ref, acc_ref, *, hw, tk, use_bf16):
    # Huge spatial extent: chunked over k with a resident (tm, 1) f32 accumulator.
    k = pl.program_id(1)
    nk = pl.num_programs(1)

    @pl.when(k == 0)
    def _():
        acc_ref[...] = jnp.zeros_like(acc_ref)

    p = p_ref[0]
    x = jnp.maximum(x_ref[...].astype(jnp.float32), EPS)
    xp = _pow_p(x, p, use_bf16)

    if hw % tk != 0:
        # Only the last spatial chunk is partial: keep iota/compare/where off the
        # hot per-chunk path (duplicated accumulate under pl.when).
        @pl.when(k < nk - 1)
        def _():
            acc_ref[...] += jnp.sum(xp, axis=-1, keepdims=True)

        @pl.when(k == nk - 1)
        def _():
            col = k * tk + lax.broadcasted_iota(jnp.int32, xp.shape, 1)
            xp_m = jnp.where(col < hw, xp, 0.0)
            acc_ref[...] += jnp.sum(xp_m, axis=-1, keepdims=True)
    else:
        acc_ref[...] += jnp.sum(xp, axis=-1, keepdims=True)

    @pl.when(k == nk - 1)
    def _():
        m = acc_ref[...] * (1.0 / hw)
        o_ref[...] = jnp.exp(jnp.log(m) * (1.0 / p)).astype(o_ref.dtype)


def _gem_lane_dense_kernel(p_ref, x_ref, o_ref, *, hw, use_bf16):
    # Transposed layout for small HW: x_ref is (HW, tn) -- spatial on sublanes,
    # rows dense across the 128 lanes; lane-dense (1, tn) output store.
    p = p_ref[0]
    x = jnp.maximum(x_ref[...].astype(jnp.float32), EPS)
    xp = _pow_p(x, p, use_bf16)
    m = jnp.sum(xp, axis=0, keepdims=True) * (1.0 / hw)       # sublane reduce
    o_ref[...] = jnp.exp(jnp.log(m) * (1.0 / p)).astype(o_ref.dtype)


def gem(x, p, *, target_block_bytes=None, vmem_limit_bytes=None,
        use_bf16_pow=None, force_lane_dense=None):
    """x: (N, C, H, W) float32, p: (1,) float32 -> (N, C, 1, 1)."""
    N, C, H, W = x.shape
    R, HW = N * C, H * W

    bf16_ok, vmem_default, target_default = _tpu_flavor()
    if use_bf16_pow is None:
        use_bf16_pow = bf16_ok
    if target_block_bytes is None:
        target_block_bytes = target_default
    if vmem_limit_bytes is None:
        vmem_limit_bytes = vmem_default

    itemsize = jnp.dtype(x.dtype).itemsize

    lane_dense = force_lane_dense
    if lane_dense is None:
        # Small, non-lane-aligned spatial extents (e.g. 7x7 = 49) waste ~128/HW
        # of every vreg in row-major layout; the transpose costs one extra HBM
        # pass, so only take it where the kernel is EUP-bound (v6e/v7x).
        lane_dense = (HW < 128) and bf16_ok

    def _cp(sem):
        return pltpu.CompilerParams(dimension_semantics=sem,
                                    vmem_limit_bytes=vmem_limit_bytes)

    if lane_dense:
        xt = x.reshape(R, HW).T                       # (HW, R), one extra HBM pass
        hw_pad = _round_up(HW, 8)
        tn_fit = max(128, (target_block_bytes // (hw_pad * itemsize)) // 128 * 128)
        r_lane_pad = _round_up(R, 128)
        tn_cap = max(128, _round_up(pl.cdiv(r_lane_pad, 4), 128))   # >= ~4 tiles
        tn = min(r_lane_pad, tn_fit, tn_cap)
        grid = (pl.cdiv(R, tn),)
        kernel = functools.partial(_gem_lane_dense_kernel, hw=HW, use_bf16=use_bf16_pow)
        out = pl.pallas_call(
            kernel,
            out_shape=jax.ShapeDtypeStruct((1, R), x.dtype),
            grid=grid,
            in_specs=[
                pl.BlockSpec(memory_space=pltpu.SMEM),      # p (scalar exponent)
                pl.BlockSpec((HW, tn), lambda j: (0, j)),   # (spatial, row) tile
            ],
            out_specs=pl.BlockSpec((1, tn), lambda j: (0, j)),
            compiler_params=_cp(("parallel",)),
        )(p, xt)
        return out.reshape(N, C, 1, 1)

    x2 = x.reshape(R, HW)
    r_pad = _round_up(R, 8)
    hw_lane_pad = _round_up(HW, 128)                  # pad to real vreg footprint
    row_bytes = hw_lane_pad * itemsize

    if row_bytes * 8 <= target_block_bytes:
        # Full spatial extent fits in one block: 1-D grid over row tiles.
        tm_fit = max(8, (target_block_bytes // row_bytes) // 8 * 8)
        tm_cap = max(8, _round_up(pl.cdiv(r_pad, 4), 8))  # >= ~4 row tiles
        tm = min(r_pad, tm_fit, tm_cap)
        grid = (pl.cdiv(R, tm),)
        kernel = functools.partial(_gem_row_kernel_single, hw=HW, use_bf16=use_bf16_pow)
        out = pl.pallas_call(
            kernel,
            out_shape=jax.ShapeDtypeStruct((R, 1), x.dtype),
            grid=grid,
            in_specs=[
                pl.BlockSpec(memory_space=pltpu.SMEM),
                pl.BlockSpec((tm, HW), lambda i: (i, 0)),
            ],
            out_specs=pl.BlockSpec((tm, 1), lambda i: (i, 0)),
            compiler_params=_cp(("parallel",)),
        )(p, x2)
        return out.reshape(N, C, 1, 1)

    # Huge spatial extent: 8-row tiles, spatial chunks in 128-lane multiples,
    # (tm, 1) f32 VMEM accumulator carries the running sum across k.
    tm = 8
    tk = min(hw_lane_pad,
             max(128, (target_block_bytes // (tm * itemsize)) // 128 * 128))
    grid = (pl.cdiv(R, tm), pl.cdiv(HW, tk))          # reduction (spatial) axis last
    kernel = functools.partial(_gem_row_kernel_multi, hw=HW, tk=tk,
                               use_bf16=use_bf16_pow)
    out = pl.pallas_call(
        kernel,
        out_shape=jax.ShapeDtypeStruct((R, 1), x.dtype),
        grid=grid,
        in_specs=[
            pl.BlockSpec(memory_space=pltpu.SMEM),
            pl.BlockSpec((tm, tk), lambda i, k: (i, k)),
        ],
        out_specs=pl.BlockSpec((tm, 1), lambda i, k: (i, 0)),
        scratch_shapes=[pltpu.VMEM((tm, 1), jnp.float32)],
        compiler_params=_cp(("parallel", "arbitrary")),
    )(p, x2)
    return out.reshape(N, C, 1, 1)


def _ref_gem(x, p):
    xp = jnp.maximum(x, EPS) ** p[0]
    return jnp.mean(xp, axis=(2, 3), keepdims=True) ** (1.0 / p[0])


if __name__ == "__main__":
    key = jax.random.PRNGKey(0)
    k0, k1, k2 = jax.random.split(key, 3)

    # Deterministic parameter init, same as nn.Parameter(torch.ones(1) * 3)
    p = jnp.ones((1,), dtype=jnp.float32) * 3.0
    bf16_default = _tpu_flavor()[0]

    # 1) Default, auto-configured path (bf16 EUP pow on v6e/v7x, f32 elsewhere).
    x = jax.random.uniform(k0, (2, 4, 16, 16), dtype=jnp.float32)
    y = gem(x, p)
    jax.block_until_ready(y)
    assert y.shape == (2, 4, 1, 1)
    tol = dict(rtol=2e-2, atol=1e-3) if bf16_default else dict(rtol=1e-5, atol=1e-6)
    assert jnp.allclose(y, _ref_gem(x, p), **tol)

    # 2) Lane-dense (transposed) path for small H*W (classic 7x7 GeM), pure f32.
    x7 = jax.random.uniform(k1, (2, 4, 7, 7), dtype=jnp.float32)
    y7 = gem(x7, p, force_lane_dense=True, use_bf16_pow=False)
    jax.block_until_ready(y7)
    assert y7.shape == (2, 4, 1, 1)
    assert jnp.allclose(y7, _ref_gem(x7, p), rtol=1e-5, atol=1e-6)

    # 3) Chunked-spatial path (accumulator + partial-last-chunk mask), pure f32.
    x20 = jax.random.uniform(k2, (2, 4, 20, 20), dtype=jnp.float32)
    y20 = gem(x20, p, target_block_bytes=4096, use_bf16_pow=False,
              force_lane_dense=False)
    jax.block_until_ready(y20)
    assert y20.shape == (2, 4, 1, 1)
    assert jnp.allclose(y20, _ref_gem(x20, p), rtol=1e-5, atol=1e-6)

    print("KERNEL_OK")
</pallas_src>

<mosaic_0001>
module attributes {stable_mosaic.version = 11 : i64} {
  func.func @_gem_row_kernel_single(%arg0: i32, %arg1: memref<1xf32, #tpu.memory_space<smem>>, %arg2: memref<8x256xf32, #tpu.memory_space<vmem>>, %arg3: memref<8x1xf32, #tpu.memory_space<vmem>>) attributes {dimension_semantics = [#tpu.dimension_semantics<parallel>], iteration_bounds = array<i64: 1>, scalar_prefetch = 0 : i64, scratch_operands = 0 : i64, tpu.core_type = #tpu.core_type<tc>, window_params = [{transform_indices = @transform_0, window_bounds = array<i64: 1>}, {transform_indices = @transform_1, window_bounds = array<i64: 8, 256>}, {transform_indices = @transform_2, window_bounds = array<i64: 8, 1>}]} {
    %c0 = arith.constant 0 : index
    %0 = memref.load %arg1[%c0] : memref<1xf32, #tpu.memory_space<smem>>
    %c0_0 = arith.constant 0 : index
    %c0_1 = arith.constant 0 : index
    %1 = vector.load %arg2[%c0_0, %c0_1] : memref<8x256xf32, #tpu.memory_space<vmem>>, vector<8x256xf32>
    %cst = arith.constant 9.99999997E-7 : f32
    %2 = vector.broadcast %cst : f32 to vector<8x256xf32>
    %3 = arith.maximumf %1, %2 : vector<8x256xf32>
    %4 = math.log %3 : vector<8x256xf32>
    %5 = vector.broadcast %0 : f32 to vector<8x256xf32>
    %6 = arith.mulf %5, %4 : vector<8x256xf32>
    %7 = math.exp %6 : vector<8x256xf32>
    %cst_2 = arith.constant dense<0.000000e+00> : vector<8xf32>
    %8 = vector.multi_reduction <add>, %7, %cst_2 [1] : vector<8x256xf32> to vector<8xf32>
    %9 = vector.shape_cast %8 : vector<8xf32> to vector<8x1xf32>
    %cst_3 = arith.constant 3.906250e-03 : f32
    %10 = vector.broadcast %cst_3 : f32 to vector<8x1xf32>
    %11 = arith.mulf %9, %10 : vector<8x1xf32>
    %12 = math.log %11 : vector<8x1xf32>
    %cst_4 = arith.constant 1.000000e+00 : f32
    %13 = arith.divf %cst_4, %0 : f32
    %14 = vector.broadcast %13 : f32 to vector<8x1xf32>
    %15 = arith.mulf %12, %14 : vector<8x1xf32>
    %16 = math.exp %15 : vector<8x1xf32>
    %c0_5 = arith.constant 0 : index
    %c0_6 = arith.constant 0 : index
    %17 = vector.load %arg3[%c0_5, %c0_6] : memref<8x1xf32, #tpu.memory_space<vmem>>, vector<8x1xf32>
    tpu.vector_store %arg3[%c0_5, %c0_6], %16 {strides = array<i32>} : memref<8x1xf32, #tpu.memory_space<vmem>>, vector<8x1xf32>,
    return
  }
  func.func @transform_0(%arg0: i32) -> i32 {
    %c0_i32 = arith.constant 0 : i32
    %c0_i32_0 = arith.constant 0 : i32
    return %c0_i32 : i32
  }
  func.func @transform_1(%arg0: i32) -> (i32, i32) {
    %c0_i32 = arith.constant 0 : i32
    %c0_i32_0 = arith.constant 0 : i32
    return %arg0, %c0_i32 : i32, i32
  }
  func.func @transform_2(%arg0: i32) -> (i32, i32) {
    %c0_i32 = arith.constant 0 : i32
    %c0_i32_0 = arith.constant 0 : i32
    return %arg0, %c0_i32 : i32, i32
  }
}

</mosaic_0001>

<llo_original>
// kernel: tpu_custom_call.1
$region0: #{tpu_custom_call.1}
  #allocation0 [shape = 'u32[]', space=smem, size = 0x4, offset = 0x4, fixed_abs, tag = 'smem constant byte address 0x4 - core index']
  #allocation1 [shape = 'u32[144,128]{1,0:T(1,128)}', space=vmem, size = 0x12000, scoped, tag = 'internal scratch']
  #allocation2 [shape = 'f32[1]{0:T(128)S(6)}', space=smem, size = 0x200, scoped, tag = 'scoped memory for tpu_custom_call.1']
  %s0 = inlined_call_operand.<no memory space> [shape: f32[1], index: 0, kind: input, shape index: {}]
  %s1 = inlined_call_operand.hbm [shape: f32[8,256], index: 1, kind: input, shape index: {}]
  %s2 = inlined_call_operand.vmem [shape: f32[8,1], index: 2, kind: output, shape index: {}]
  %s3 = sld [smem:[#allocation0]]
  $region22: #{tpu_custom_call.1} parent=0
    _
  %s5 = ssub.s32 1, %s3
  %s6 = scalar_select 0, %s5, %s3
  %7 = sst [smem:[#allocation2]] %s0
  $region1: #{tpu_custom_call.1} parent=0
    #allocation3 [shape = 'u8[8192]{0}', space=vmem, size = 0x2000, scoped, tag = 'input window, operand 1, single buffered']
    #allocation4 [shape = 's32[1]{0}', space=sflag, size = 0x4, scoped, tag = 'scoped memory for tpu_custom_call.1']
    %8 = vsyncpa [#allocation4], 0
    // Predicated region
    $region2: #{tpu_custom_call.1} parent=1 // pred_check
      _
    $region3: #{tpu_custom_call.1} parent=1 // pred_check_branch
      %10 = sbr.rel (0) target = $region5
    $region4: #{tpu_custom_call.1} parent=1 // pred_region
      _
    $region5: #{tpu_custom_call.1} parent=1 // pred_fallthru
      _
    // Predicated region
    $region6: #{tpu_custom_call.1} parent=1 // pred_check
      _
    $region7: #{tpu_custom_call.1} parent=1 // pred_check_branch
      %12 = sbr.rel (0) target = $region9
    $region8: #{tpu_custom_call.1} parent=1 // pred_region
      %s14 = ssub.s32 256, 256
      %15 = vsyncadd [#allocation4], %s14
      %s17 = sshll.u32 [#allocation3], 4
      %s18 = int_to_ptr.vmem [resolvable:$true] %s17
      %20 = dma.hbm_to_vmem [thread:$0]  %s1, 256, %s18, [#allocation4]
    $region9: #{tpu_custom_call.1} parent=1 // pred_fallthru
      _
    // Predicated region
    $region10: #{tpu_custom_call.1} parent=1 // pred_check
      _
    $region11: #{tpu_custom_call.1} parent=1 // pred_check_branch
      %22 = sbr.rel (0) target = $region13
    $region12: #{tpu_custom_call.1} parent=1 // pred_region
      %23 = dma.done [#allocation4], 256
    $region13: #{tpu_custom_call.1} parent=1 // pred_fallthru
      _
    %s24 = sld [smem:[#allocation2]]
    %v25 = vld [vmem:[#allocation3] sm:$0xff]
    %v26 = vld [vmem:[#allocation3 + $0x8] sm:$0xff]
    %v27 = vmax.f32 %v25, 1e-06
    %v28 = vmax.f32 %v26, 1e-06
    %v29 = vlog2.pop %v27
    %v30 = vmul.f32 %v29, 0.6931472
    %v31 = vlog2.pop %v28
    %v32 = vmul.f32 %v31, 0.6931472
    %v33 = vstv %s24
    %v34 = vmul.f32 %v33, %v30
    %v35 = vmul.f32 %v33, %v32
    %v36 = vmul.f32 %v34, 1.442695
    %v37 = vpow.pop %v36
    %v38 = vmul.f32 %v35, 1.442695
    %v39 = vpow.pop %v38
    %v40 = vadd.f32 %v37, %v39
    %41 = vadd.xlane.f32.xlu0 %v40
    %v42 = vpop.xlane.xlu0 %41
    %v43 = vmul.f32 %v42, 0.00390625
    %v44 = vlog2.pop %v43
    %v45 = vmul.f32 %v44, 0.6931472
    %v46 = vstv %s24
    %v47 = vrcp.pop %v46
    %s48 = vtos %v47
    %v49 = vstv %s48
    %v50 = vmul.f32 %v45, %v49
    %v51 = vmul.f32 %v50, 1.442695
    %v52 = vpow.pop %v51
    %vm53 = vcmask 7168
    %54 = vst.msk [vmem:[%s2] sm:$0xff] %vm53, %v52
    // Predicated region
    $region14: #{tpu_custom_call.1} parent=1 // pred_check
      _
    $region15: #{tpu_custom_call.1} parent=1 // pred_check_branch
      %56 = sbr.rel (0) target = $region17
    $region16: #{tpu_custom_call.1} parent=1 // pred_region
      _
    $region17: #{tpu_custom_call.1} parent=1 // pred_fallthru
      _
    // Predicated region
    $region18: #{tpu_custom_call.1} parent=1 // pred_check
      _
    $region19: #{tpu_custom_call.1} parent=1 // pred_check_branch
      %58 = sbr.rel (0) target = $region21
    $region20: #{tpu_custom_call.1} parent=1 // pred_region
      _
    $region21: #{tpu_custom_call.1} parent=1 // pred_fallthru
      _
    %59 = vsyncpa [#allocation4], 1

</llo_original>
